<compile_context>
chip_gen: v7x
topology: tpu7x:2x2x1
jax: 0.10.0
libtpu: 0.0.40
codegen_flags: <defaults>
</compile_context>

<pallas_src>
import functools

import jax
import jax.numpy as jnp
from jax.experimental import pallas as pl
from jax.experimental.pallas import tpu as pltpu


def attention_kernel(dec_ref, enc_ref, wd_ref, we_ref, b_ref, vw_ref, o_ref,
                     dproj_ref, scores_ref, *, energy_dtype):
    # dec_ref    : (TB, Hd)       decoder hidden states for this batch tile
    # enc_ref    : (TS, TB, 2He)  encoder outputs, native [S, B, 2He] layout slice
    # wd_ref     : (Hd, Hd)       attn weight applied to decoder features
    # we_ref     : (2He, Hd)      attn weight applied to encoder features
    # b_ref      : (1, Hd)        attn bias
    # vw_ref     : (1, Hd)        v weight (row vector)
    # o_ref      : (TB, S)        softmax attention (lane-dense, S on lanes)
    # dproj_ref  : (TB, Hd)       VMEM scratch: decoder projection (per b-tile)
    # scores_ref : (S, TB)        VMEM scratch: raw scores across all S chunks
    s_idx = pl.program_id(1)
    n_s = pl.num_programs(1)
    TS, TB, He2 = enc_ref.shape
    Hd = dec_ref.shape[1]

    # Decoder projection: once per batch tile, persists across the S loop.
    @pl.when(s_idx == 0)
    def _():
        dproj_ref[...] = jnp.dot(dec_ref[...], wd_ref[...],
                                 preferred_element_type=jnp.float32)

    # Encoder projection: one MXU matmul per (batch, seq) tile.  TB is a
    # multiple of 8 (wrapper pads B), so this reshape is layout-free.
    enc_flat = enc_ref[...].reshape(TS * TB, He2)                  # (TS*TB, 2He)
    enc_proj = jnp.dot(enc_flat, we_ref[...],
                       preferred_element_type=jnp.float32)         # (TS*TB, Hd)
    enc_proj = enc_proj.reshape(TS, TB, Hd)                        # (TS, TB, Hd)

    pre = (enc_proj
           + dproj_ref[...][None, :, :]
           + b_ref[...].reshape(1, 1, Hd))                         # (TS, TB, Hd)
    # bf16 tanh rides the EUP's bf16 path (~2x) on v6e/v7x; f32 on v5e/exact.
    energy = jnp.tanh(pre.astype(energy_dtype)).astype(jnp.float32)

    # v projection == lane-axis reduction over Hd -> (TS, TB) score chunk.
    chunk = jnp.sum(energy * vw_ref[...].reshape(1, 1, Hd), axis=-1)

    row0 = pl.multiple_of(s_idx * TS, TS)
    scores_ref[pl.ds(row0, TS), :] = chunk

    # Final S step: softmax over the full source length, lane-dense writeback.
    @pl.when(s_idx == n_s - 1)
    def _():
        sc = scores_ref[...]                                       # (S, TB)
        m = jnp.max(sc, axis=0, keepdims=True)                     # (1, TB)
        e = jnp.exp(sc - m)
        denom = jnp.sum(e, axis=0, keepdims=True)                  # (1, TB)
        attn = e / denom                                           # exact divide
        o_ref[...] = attn.T.astype(o_ref.dtype)                    # (TB, S)


def _choose_batch_tile(Bp, He2, *, target_tiles=8, min_chunk_bytes=512):
    """TB: multiple of 8 dividing Bp; aim for >= target_tiles grid steps on the
    batch axis (>= 2 per TensorCore on v7x, >= 4 on single-TC v5e/v6e) while
    keeping each strided enc DMA chunk (TB*He2*4 bytes) reasonably sized."""
    cands = [tb for tb in range(8, Bp + 1, 8) if Bp % tb == 0]
    if not cands:
        return Bp
    ok = [tb for tb in cands if tb * He2 * 4 >= min_chunk_bytes] or cands
    enough = [tb for tb in ok if Bp // tb >= target_tiles]
    return max(enough) if enough else min(ok)


def _choose_s_tile(S, TB, He2, Hd, *, vmem_budget_bytes=24 * 1024 * 1024):
    """TS: divisor of S that is either the full S or a multiple of 128 (so the
    scores-scratch row offsets stay 8/128-aligned), largest that fits the
    per-step VMEM budget (sized for v7x's 64 MiB physical VMEM)."""
    def step_bytes(ts):
        enc = 2 * ts * TB * He2 * 4                 # double-buffered enc tile
        inter = 4 * ts * TB * Hd * 4                # enc_proj / pre / energy / chunk
        scores = S * max(TB, 128) * 4               # (S, TB) scratch, lane-padded
        out = 2 * TB * S * 4                        # double-buffered output tile
        dec = 2 * TB * Hd * 4
        weights = 2 * (Hd * Hd + He2 * Hd + 2 * Hd) * 4
        return enc + inter + scores + out + dec + weights

    cands = [ts for ts in range(1, S + 1)
             if S % ts == 0 and (ts == S or ts % 128 == 0)]
    cands.sort(reverse=True)
    for ts in cands:
        if step_bytes(ts) <= vmem_budget_bytes:
            return ts
    return cands[-1]


def attention_forward(dec_hidden, enc_outputs, w_attn, b_attn, w_v, *,
                      energy_dtype=jnp.float32):
    """
    dec_hidden  : [B, Hd]
    enc_outputs : [S, B, 2He]     (native layout, no pre-transpose)
    w_attn      : [Hd, 2He + Hd]  (PyTorch nn.Linear weight layout [out, in])
    b_attn      : [Hd]
    w_v         : [1, Hd]
    returns     : [B, S]          softmax attention weights
    """
    B, Hd = dec_hidden.shape
    S, _, He2 = enc_outputs.shape

    # Tiny weight-only glue: split the concat weight (concat order in the
    # reference forward is (dec_hidden, enc_outputs)).
    w_t = jnp.transpose(w_attn)                 # [Hd + 2He, Hd]
    w_dec = w_t[:Hd]                            # [Hd, Hd]
    w_enc = w_t[Hd:]                            # [2He, Hd]
    bias = b_attn.reshape(1, Hd)                # [1, Hd]
    v_w = w_v.reshape(1, Hd)                    # [1, Hd]

    # Pad B to a multiple of 8 so every BlockSpec batch dim is sublane-aligned
    # and the in-kernel reshape is layout-free (padded rows are sliced off).
    Bp = ((B + 7) // 8) * 8
    if Bp != B:
        dec_hidden = jnp.pad(dec_hidden, ((0, Bp - B), (0, 0)))
        enc_outputs = jnp.pad(enc_outputs, ((0, 0), (0, Bp - B), (0, 0)))

    TB = _choose_batch_tile(Bp, He2)
    TS = _choose_s_tile(S, TB, He2, Hd)
    nb, ns = Bp // TB, S // TS

    kernel = functools.partial(attention_kernel, energy_dtype=energy_dtype)

    flops = 2 * Bp * S * He2 * Hd + 2 * Bp * Hd * Hd + 2 * Bp * S * Hd
    transcendentals = Bp * S * Hd + Bp * S
    bytes_accessed = 4 * (Bp * Hd + S * Bp * He2 + Hd * Hd + He2 * Hd
                          + 2 * Hd + Bp * S)

    def build(single_buffer_weights):
        # Constant-index inputs never get re-DMA'd; single-buffering them
        # halves their VMEM footprint (matters at real weight sizes on v7x/v5e).
        pm = ({"pipeline_mode": pl.Buffered(1)}
              if single_buffer_weights else {})
        return pl.pallas_call(
            kernel,
            out_shape=jax.ShapeDtypeStruct((Bp, S), jnp.float32),
            grid_spec=pltpu.PrefetchScalarGridSpec(
                num_scalar_prefetch=0,
                grid=(nb, ns),
                in_specs=[
                    pl.BlockSpec((TB, Hd), lambda b, s: (b, 0)),          # dec
                    pl.BlockSpec((TS, TB, He2), lambda b, s: (s, b, 0)),  # enc
                    pl.BlockSpec((Hd, Hd), lambda b, s: (0, 0), **pm),    # w_dec
                    pl.BlockSpec((He2, Hd), lambda b, s: (0, 0), **pm),   # w_enc
                    pl.BlockSpec((1, Hd), lambda b, s: (0, 0), **pm),     # bias
                    pl.BlockSpec((1, Hd), lambda b, s: (0, 0), **pm),     # v
                ],
                out_specs=pl.BlockSpec((TB, S), lambda b, s: (b, 0)),     # lane-dense
                scratch_shapes=[
                    pltpu.VMEM((TB, Hd), jnp.float32),   # decoder projection
                    pltpu.VMEM((S, TB), jnp.float32),    # raw scores across S chunks
                ],
            ),
            compiler_params=pltpu.CompilerParams(
                dimension_semantics=("parallel", "arbitrary"),
                vmem_limit_bytes=48 * 1024 * 1024),
            cost_estimate=pl.CostEstimate(
                flops=flops, transcendentals=transcendentals,
                bytes_accessed=bytes_accessed),
        )(dec_hidden, enc_outputs, w_dec, w_enc, bias, v_w)

    try:
        out = build(single_buffer_weights=True)
    except Exception:
        # Some jax versions reject pipeline_mode=Buffered(1); default buffering.
        out = build(single_buffer_weights=False)

    return out[:B]                               # [B, S]


def ref_attention(dec_hidden, enc_outputs, w_attn, b_attn, w_v):
    """Pure-JAX reference mirroring the PyTorch forward exactly."""
    S = enc_outputs.shape[0]
    dec_rep = jnp.repeat(dec_hidden[:, None, :], S, axis=1)      # [B, S, Hd]
    enc = jnp.transpose(enc_outputs, (1, 0, 2))                  # [B, S, 2He]
    cat = jnp.concatenate([dec_rep, enc], axis=2)                # [B, S, 2He+Hd]
    energy = jnp.tanh(cat @ w_attn.T + b_attn)                   # [B, S, Hd]
    att = (energy @ w_v.T)[..., 0]                               # [B, S]
    return jax.nn.softmax(att, axis=1)


def _make_params(key, enc_hidden_dim, dec_hidden_dim):
    in_dim = enc_hidden_dim * 2 + dec_hidden_dim
    k1, k2, k3 = jax.random.split(key, 3)
    bound_attn = 1.0 / float(jnp.sqrt(in_dim))
    w_attn = jax.random.uniform(k1, (dec_hidden_dim, in_dim),
                                minval=-bound_attn, maxval=bound_attn,
                                dtype=jnp.float32)
    b_attn = jax.random.uniform(k2, (dec_hidden_dim,),
                                minval=-bound_attn, maxval=bound_attn,
                                dtype=jnp.float32)
    bound_v = 1.0 / float(jnp.sqrt(dec_hidden_dim))
    w_v = jax.random.uniform(k3, (1, dec_hidden_dim),
                             minval=-bound_v, maxval=bound_v,
                             dtype=jnp.float32)
    return w_attn, b_attn, w_v


def _check(B, S, enc_hidden_dim, dec_hidden_dim, seed, energy_dtype, atol, rtol):
    key = jax.random.PRNGKey(seed)
    kp, k4, k5 = jax.random.split(key, 3)
    w_attn, b_attn, w_v = _make_params(kp, enc_hidden_dim, dec_hidden_dim)
    dec_hidden = jax.random.normal(k4, (B, dec_hidden_dim), dtype=jnp.float32)
    enc_outputs = jax.random.normal(k5, (S, B, enc_hidden_dim * 2),
                                    dtype=jnp.float32)

    out = attention_forward(dec_hidden, enc_outputs, w_attn, b_attn, w_v,
                            energy_dtype=energy_dtype)
    out = jax.block_until_ready(out)
    ref = ref_attention(dec_hidden, enc_outputs, w_attn, b_attn, w_v)

    assert out.shape == (B, S), out.shape
    assert jnp.allclose(out, ref, atol=atol, rtol=rtol), (out, ref)
    # Exact-divide softmax: rows sum to 1 regardless of energy_dtype.
    assert jnp.allclose(jnp.sum(out, axis=1), 1.0, atol=1e-5)


if __name__ == "__main__":
    # Primary shapes consistent with the module (small); exact f32 path.
    _check(B=2, S=8, enc_hidden_dim=16, dec_hidden_dim=32, seed=0,
           energy_dtype=jnp.float32, atol=1e-4, rtol=1e-4)
    # Multi-batch-tile parallel grid + fully lane-dense (128-lane) output path.
    _check(B=16, S=128, enc_hidden_dim=16, dec_hidden_dim=32, seed=1,
           energy_dtype=jnp.float32, atol=1e-4, rtol=1e-4)
    # bf16-tanh fast path (EUP bf16 on v6e/v7x); looser tolerance by design.
    _check(B=16, S=128, enc_hidden_dim=16, dec_hidden_dim=32, seed=2,
           energy_dtype=jnp.bfloat16, atol=1e-2, rtol=1e-2)
    print("KERNEL_OK")
</pallas_src>

<mosaic_0001>
module attributes {stable_mosaic.version = 11 : i64} {
  func.func @attention_kernel(%arg0: i32, %arg1: i32, %arg2: memref<8x32xf32, #tpu.memory_space<vmem>>, %arg3: memref<8x8x32xf32, #tpu.memory_space<vmem>>, %arg4: memref<32x32xf32, #tpu.memory_space<vmem>>, %arg5: memref<32x32xf32, #tpu.memory_space<vmem>>, %arg6: memref<1x32xf32, #tpu.memory_space<vmem>>, %arg7: memref<1x32xf32, #tpu.memory_space<vmem>>, %arg8: memref<8x8xf32, #tpu.memory_space<vmem>>, %arg9: memref<8x32xf32, #tpu.memory_space<vmem>>, %arg10: memref<8x8xf32, #tpu.memory_space<vmem>>) attributes {dimension_semantics = [#tpu.dimension_semantics<parallel>, #tpu.dimension_semantics<arbitrary>], iteration_bounds = array<i64: 1, 1>, scalar_prefetch = 0 : i64, scratch_operands = 2 : i64, tpu.core_type = #tpu.core_type<tc>, window_params = [{transform_indices = @transform_0, window_bounds = array<i64: 8, 32>}, {transform_indices = @transform_1, window_bounds = array<i64: 8, 8, 32>}, {pipeline_mode = #tpu.pipeline_mode<synchronous>, transform_indices = @transform_2, window_bounds = array<i64: 32, 32>}, {pipeline_mode = #tpu.pipeline_mode<synchronous>, transform_indices = @transform_3, window_bounds = array<i64: 32, 32>}, {pipeline_mode = #tpu.pipeline_mode<synchronous>, transform_indices = @transform_4, window_bounds = array<i64: 1, 32>}, {pipeline_mode = #tpu.pipeline_mode<synchronous>, transform_indices = @transform_5, window_bounds = array<i64: 1, 32>}, {transform_indices = @transform_6, window_bounds = array<i64: 8, 8>}]} {
    %c0_i32 = arith.constant 0 : i32
    %0 = arith.cmpi eq, %arg1, %c0_i32 : i32
    %1 = arith.extui %0 : i1 to i32
    %c0_i32_0 = arith.constant 0 : i32
    %2 = arith.cmpi ne, %1, %c0_i32_0 : i32
    scf.if %2 {
      %c0_15 = arith.constant 0 : index
      %c0_16 = arith.constant 0 : index
      %29 = vector.load %arg2[%c0_15, %c0_16] : memref<8x32xf32, #tpu.memory_space<vmem>>, vector<8x32xf32>
      %c0_17 = arith.constant 0 : index
      %c0_18 = arith.constant 0 : index
      %30 = vector.load %arg4[%c0_17, %c0_18] : memref<32x32xf32, #tpu.memory_space<vmem>>, vector<32x32xf32>
      %cst_19 = arith.constant dense<0.000000e+00> : vector<8x32xf32>
      %31 = tpu.matmul %29, %30, %cst_19 {dimension_numbers = #tpu.dot_dimension_numbers<[1], [0], [0], [1], [0, 0, 1, 1], [], []>} : vector<8x32xf32>, vector<32x32xf32>, vector<8x32xf32> -> vector<8x32xf32>
      %c0_20 = arith.constant 0 : index
      %c0_21 = arith.constant 0 : index
      %32 = vector.load %arg9[%c0_20, %c0_21] : memref<8x32xf32, #tpu.memory_space<vmem>>, vector<8x32xf32>
      tpu.vector_store %arg9[%c0_20, %c0_21], %31 {strides = array<i32>} : memref<8x32xf32, #tpu.memory_space<vmem>>, vector<8x32xf32>,
    } else {
    }
    %c0 = arith.constant 0 : index
    %c0_1 = arith.constant 0 : index
    %c0_2 = arith.constant 0 : index
    %3 = vector.load %arg3[%c0, %c0_1, %c0_2] : memref<8x8x32xf32, #tpu.memory_space<vmem>>, vector<8x8x32xf32>
    %4 = vector.shape_cast %3 : vector<8x8x32xf32> to vector<64x32xf32>
    %c0_3 = arith.constant 0 : index
    %c0_4 = arith.constant 0 : index
    %5 = vector.load %arg5[%c0_3, %c0_4] : memref<32x32xf32, #tpu.memory_space<vmem>>, vector<32x32xf32>
    %cst = arith.constant dense<0.000000e+00> : vector<64x32xf32>
    %6 = tpu.matmul %4, %5, %cst {dimension_numbers = #tpu.dot_dimension_numbers<[1], [0], [0], [1], [0, 0, 1, 1], [], []>} : vector<64x32xf32>, vector<32x32xf32>, vector<64x32xf32> -> vector<64x32xf32>
    %7 = vector.shape_cast %6 : vector<64x32xf32> to vector<8x8x32xf32>
    %c0_5 = arith.constant 0 : index
    %c0_6 = arith.constant 0 : index
    %8 = vector.load %arg9[%c0_5, %c0_6] : memref<8x32xf32, #tpu.memory_space<vmem>>, vector<8x32xf32>
    %9 = vector.shape_cast %8 : vector<8x32xf32> to vector<1x8x32xf32>
    %10 = vector.broadcast %9 : vector<1x8x32xf32> to vector<8x8x32xf32>
    %11 = arith.addf %7, %10 : vector<8x8x32xf32>
    %c0_7 = arith.constant 0 : index
    %c0_8 = arith.constant 0 : index
    %12 = vector.load %arg6[%c0_7, %c0_8] : memref<1x32xf32, #tpu.memory_space<vmem>>, vector<1x32xf32>
    %13 = vector.shape_cast %12 : vector<1x32xf32> to vector<1x1x32xf32>
    %14 = vector.broadcast %13 : vector<1x1x32xf32> to vector<8x8x32xf32>
    %15 = arith.addf %11, %14 : vector<8x8x32xf32>
    %16 = math.tanh %15 : vector<8x8x32xf32>
    %c0_9 = arith.constant 0 : index
    %c0_10 = arith.constant 0 : index
    %17 = vector.load %arg7[%c0_9, %c0_10] : memref<1x32xf32, #tpu.memory_space<vmem>>, vector<1x32xf32>
    %18 = vector.shape_cast %17 : vector<1x32xf32> to vector<1x1x32xf32>
    %19 = vector.broadcast %18 : vector<1x1x32xf32> to vector<8x8x32xf32>
    %20 = arith.mulf %16, %19 : vector<8x8x32xf32>
    %cst_11 = arith.constant dense<0.000000e+00> : vector<8x8xf32>
    %21 = vector.multi_reduction <add>, %20, %cst_11 [2] : vector<8x8x32xf32> to vector<8x8xf32>
    %c8_i32 = arith.constant 8 : i32
    %22 = arith.muli %arg1, %c8_i32 : i32
    %23 = tpu.assume_multiple %22, 8 : i32
    %24 = arith.index_cast %23 : i32 to index
    %c0_12 = arith.constant 0 : index
    %25 = vector.load %arg10[%24, %c0_12] : memref<8x8xf32, #tpu.memory_space<vmem>>, vector<8x8xf32>
    tpu.vector_store %arg10[%24, %c0_12], %21 {strides = array<i32>} : memref<8x8xf32, #tpu.memory_space<vmem>>, vector<8x8xf32>,
    %c0_i32_13 = arith.constant 0 : i32
    %26 = arith.cmpi eq, %arg1, %c0_i32_13 : i32
    %27 = arith.extui %26 : i1 to i32
    %c0_i32_14 = arith.constant 0 : i32
    %28 = arith.cmpi ne, %27, %c0_i32_14 : i32
    scf.if %28 {
      %c0_15 = arith.constant 0 : index
      %c0_16 = arith.constant 0 : index
      %29 = vector.load %arg10[%c0_15, %c0_16] : memref<8x8xf32, #tpu.memory_space<vmem>>, vector<8x8xf32>
      %cst_17 = arith.constant dense<0xFF800000> : vector<8xf32>
      %30 = vector.multi_reduction <maximumf>, %29, %cst_17 [0] : vector<8x8xf32> to vector<8xf32>
      %31 = vector.shape_cast %30 : vector<8xf32> to vector<1x8xf32>
      %32 = vector.broadcast %31 : vector<1x8xf32> to vector<8x8xf32>
      %33 = arith.subf %29, %32 : vector<8x8xf32>
      %34 = math.exp %33 : vector<8x8xf32>
      %cst_18 = arith.constant dense<0.000000e+00> : vector<8xf32>
      %35 = vector.multi_reduction <add>, %34, %cst_18 [0] : vector<8x8xf32> to vector<8xf32>
      %36 = vector.shape_cast %35 : vector<8xf32> to vector<1x8xf32>
      %37 = vector.broadcast %36 : vector<1x8xf32> to vector<8x8xf32>
      %38 = arith.divf %34, %37 : vector<8x8xf32>
      %39 = tpu.transpose %38, [1, 0] : vector<8x8xf32> -> vector<8x8xf32>
      %c0_19 = arith.constant 0 : index
      %c0_20 = arith.constant 0 : index
      %40 = vector.load %arg8[%c0_19, %c0_20] : memref<8x8xf32, #tpu.memory_space<vmem>>, vector<8x8xf32>
      tpu.vector_store %arg8[%c0_19, %c0_20], %39 {strides = array<i32>} : memref<8x8xf32, #tpu.memory_space<vmem>>, vector<8x8xf32>,
    } else {
    }
    return
  }
  func.func @transform_0(%arg0: i32, %arg1: i32) -> (i32, i32) {
    %c0_i32 = arith.constant 0 : i32
    %c0_i32_0 = arith.constant 0 : i32
    return %arg0, %c0_i32 : i32, i32
  }
  func.func @transform_1(%arg0: i32, %arg1: i32) -> (i32, i32, i32) {
    %c0_i32 = arith.constant 0 : i32
    %c0_i32_0 = arith.constant 0 : i32
    return %arg1, %arg0, %c0_i32 : i32, i32, i32
  }
  func.func @transform_2(%arg0: i32, %arg1: i32) -> (i32, i32) {
    %c0_i32 = arith.constant 0 : i32
    %c0_i32_0 = arith.constant 0 : i32
    %c0_i32_1 = arith.constant 0 : i32
    return %c0_i32, %c0_i32_0 : i32, i32
  }
  func.func @transform_3(%arg0: i32, %arg1: i32) -> (i32, i32) {
    %c0_i32 = arith.constant 0 : i32
    %c0_i32_0 = arith.constant 0 : i32
    %c0_i32_1 = arith.constant 0 : i32
    return %c0_i32, %c0_i32_0 : i32, i32
  }
  func.func @transform_4(%arg0: i32, %arg1: i32) -> (i32, i32) {
    %c0_i32 = arith.constant 0 : i32
    %c0_i32_0 = arith.constant 0 : i32
    %c0_i32_1 = arith.constant 0 : i32
    return %c0_i32, %c0_i32_0 : i32, i32
  }
  func.func @transform_5(%arg0: i32, %arg1: i32) -> (i32, i32) {
    %c0_i32 = arith.constant 0 : i32
    %c0_i32_0 = arith.constant 0 : i32
    %c0_i32_1 = arith.constant 0 : i32
    return %c0_i32, %c0_i32_0 : i32, i32
  }
  func.func @transform_6(%arg0: i32, %arg1: i32) -> (i32, i32) {
    %c0_i32 = arith.constant 0 : i32
    %c0_i32_0 = arith.constant 0 : i32
    return %arg0, %c0_i32 : i32, i32
  }
}

module attributes {stable_mosaic.version = 11 : i64} {
  func.func @attention_kernel(%arg0: i32, %arg1: i32, %arg2: memref<8x32xf32, #tpu.memory_space<vmem>>, %arg3: memref<8x8x32xf32, #tpu.memory_space<vmem>>, %arg4: memref<32x32xf32, #tpu.memory_space<vmem>>, %arg5: memref<32x32xf32, #tpu.memory_space<vmem>>, %arg6: memref<1x32xf32, #tpu.memory_space<vmem>>, %arg7: memref<1x32xf32, #tpu.memory_space<vmem>>, %arg8: memref<8x8xf32, #tpu.memory_space<vmem>>, %arg9: memref<8x32xf32, #tpu.memory_space<vmem>>, %arg10: memref<8x8xf32, #tpu.memory_space<vmem>>) attributes {dimension_semantics = [#tpu.dimension_semantics<parallel>, #tpu.dimension_semantics<arbitrary>], iteration_bounds = array<i64: 1, 1>, scalar_prefetch = 0 : i64, scratch_operands = 2 : i64, tpu.core_type = #tpu.core_type<tc>, window_params = [{transform_indices = @transform_0, window_bounds = array<i64: 8, 32>}, {transform_indices = @transform_1, window_bounds = array<i64: 8, 8, 32>}, {pipeline_mode = #tpu.pipeline_mode<synchronous>, transform_indices = @transform_2, window_bounds = array<i64: 32, 32>}, {pipeline_mode = #tpu.pipeline_mode<synchronous>, transform_indices = @transform_3, window_bounds = array<i64: 32, 32>}, {pipeline_mode = #tpu.pipeline_mode<synchronous>, transform_indices = @transform_4, window_bounds = array<i64: 1, 32>}, {pipeline_mode = #tpu.pipeline_mode<synchronous>, transform_indices = @transform_5, window_bounds = array<i64: 1, 32>}, {transform_indices = @transform_6, window_bounds = array<i64: 8, 8>}]} {
    %c0_i32 = arith.constant 0 : i32
    %0 = arith.cmpi eq, %arg1, %c0_i32 : i32
    %1 = arith.extui %0 : i1 to i32
    %c0_i32_0 = arith.constant 0 : i32
    %2 = arith.cmpi ne, %1, %c0_i32_0 : i32
    scf.if %2 {
      %c0_15 = arith.constant 0 : index
      %c0_16 = arith.constant 0 : index
      %29 = vector.load %arg2[%c0_15, %c0_16] : memref<8x32xf32, #tpu.memory_space<vmem>>, vector<8x32xf32>
      %c0_17 = arith.constant 0 : index
      %c0_18 = arith.constant 0 : index
      %30 = vector.load %arg4[%c0_17, %c0_18] : memref<32x32xf32, #tpu.memory_space<vmem>>, vector<32x32xf32>
      %cst_19 = arith.constant dense<0.000000e+00> : vector<8x32xf32>
      %31 = tpu.matmul %29, %30, %cst_19 {dimension_numbers = #tpu.dot_dimension_numbers<[1], [0], [0], [1], [0, 0, 1, 1], [], []>} : vector<8x32xf32>, vector<32x32xf32>, vector<8x32xf32> -> vector<8x32xf32>
      %c0_20 = arith.constant 0 : index
      %c0_21 = arith.constant 0 : index
      %32 = vector.load %arg9[%c0_20, %c0_21] : memref<8x32xf32, #tpu.memory_space<vmem>>, vector<8x32xf32>
      tpu.vector_store %arg9[%c0_20, %c0_21], %31 {strides = array<i32>} : memref<8x32xf32, #tpu.memory_space<vmem>>, vector<8x32xf32>,
    } else {
    }
    %c0 = arith.constant 0 : index
    %c0_1 = arith.constant 0 : index
    %c0_2 = arith.constant 0 : index
    %3 = vector.load %arg3[%c0, %c0_1, %c0_2] : memref<8x8x32xf32, #tpu.memory_space<vmem>>, vector<8x8x32xf32>
    %4 = vector.shape_cast %3 : vector<8x8x32xf32> to vector<64x32xf32>
    %c0_3 = arith.constant 0 : index
    %c0_4 = arith.constant 0 : index
    %5 = vector.load %arg5[%c0_3, %c0_4] : memref<32x32xf32, #tpu.memory_space<vmem>>, vector<32x32xf32>
    %cst = arith.constant dense<0.000000e+00> : vector<64x32xf32>
    %6 = tpu.matmul %4, %5, %cst {dimension_numbers = #tpu.dot_dimension_numbers<[1], [0], [0], [1], [0, 0, 1, 1], [], []>} : vector<64x32xf32>, vector<32x32xf32>, vector<64x32xf32> -> vector<64x32xf32>
    %7 = vector.shape_cast %6 : vector<64x32xf32> to vector<8x8x32xf32>
    %c0_5 = arith.constant 0 : index
    %c0_6 = arith.constant 0 : index
    %8 = vector.load %arg9[%c0_5, %c0_6] : memref<8x32xf32, #tpu.memory_space<vmem>>, vector<8x32xf32>
    %9 = vector.shape_cast %8 : vector<8x32xf32> to vector<1x8x32xf32>
    %10 = vector.broadcast %9 : vector<1x8x32xf32> to vector<8x8x32xf32>
    %11 = arith.addf %7, %10 : vector<8x8x32xf32>
    %c0_7 = arith.constant 0 : index
    %c0_8 = arith.constant 0 : index
    %12 = vector.load %arg6[%c0_7, %c0_8] : memref<1x32xf32, #tpu.memory_space<vmem>>, vector<1x32xf32>
    %13 = vector.shape_cast %12 : vector<1x32xf32> to vector<1x1x32xf32>
    %14 = vector.broadcast %13 : vector<1x1x32xf32> to vector<8x8x32xf32>
    %15 = arith.addf %11, %14 : vector<8x8x32xf32>
    %16 = math.tanh %15 : vector<8x8x32xf32>
    %c0_9 = arith.constant 0 : index
    %c0_10 = arith.constant 0 : index
    %17 = vector.load %arg7[%c0_9, %c0_10] : memref<1x32xf32, #tpu.memory_space<vmem>>, vector<1x32xf32>
    %18 = vector.shape_cast %17 : vector<1x32xf32> to vector<1x1x32xf32>
    %19 = vector.broadcast %18 : vector<1x1x32xf32> to vector<8x8x32xf32>
    %20 = arith.mulf %16, %19 : vector<8x8x32xf32>
    %cst_11 = arith.constant dense<0.000000e+00> : vector<8x8xf32>
    %21 = vector.multi_reduction <add>, %20, %cst_11 [2] : vector<8x8x32xf32> to vector<8x8xf32>
    %c8_i32 = arith.constant 8 : i32
    %22 = arith.muli %arg1, %c8_i32 : i32
    %23 = tpu.assume_multiple %22, 8 : i32
    %24 = arith.index_cast %23 : i32 to index
    %c0_12 = arith.constant 0 : index
    %25 = vector.load %arg10[%24, %c0_12] : memref<8x8xf32, #tpu.memory_space<vmem>>, vector<8x8xf32>
    tpu.vector_store %arg10[%24, %c0_12], %21 {strides = array<i32>} : memref<8x8xf32, #tpu.memory_space<vmem>>, vector<8x8xf32>,
    %c0_i32_13 = arith.constant 0 : i32
    %26 = arith.cmpi eq, %arg1, %c0_i32_13 : i32
    %27 = arith.extui %26 : i1 to i32
    %c0_i32_14 = arith.constant 0 : i32
    %28 = arith.cmpi ne, %27, %c0_i32_14 : i32
    scf.if %28 {
      %c0_15 = arith.constant 0 : index
      %c0_16 = arith.constant 0 : index
      %29 = vector.load %arg10[%c0_15, %c0_16] : memref<8x8xf32, #tpu.memory_space<vmem>>, vector<8x8xf32>
      %cst_17 = arith.constant dense<0xFF800000> : vector<8xf32>
      %30 = vector.multi_reduction <maximumf>, %29, %cst_17 [0] : vector<8x8xf32> to vector<8xf32>
      %31 = vector.shape_cast %30 : vector<8xf32> to vector<1x8xf32>
      %32 = vector.broadcast %31 : vector<1x8xf32> to vector<8x8xf32>
      %33 = arith.subf %29, %32 : vector<8x8xf32>
      %34 = math.exp %33 : vector<8x8xf32>
      %cst_18 = arith.constant dense<0.000000e+00> : vector<8xf32>
      %35 = vector.multi_reduction <add>, %34, %cst_18 [0] : vector<8x8xf32> to vector<8xf32>
      %36 = vector.shape_cast %35 : vector<8xf32> to vector<1x8xf32>
      %37 = vector.broadcast %36 : vector<1x8xf32> to vector<8x8xf32>
      %38 = arith.divf %34, %37 : vector<8x8xf32>
      %39 = tpu.transpose %38, [1, 0] : vector<8x8xf32> -> vector<8x8xf32>
      %c0_19 = arith.constant 0 : index
      %c0_20 = arith.constant 0 : index
      %40 = vector.load %arg8[%c0_19, %c0_20] : memref<8x8xf32, #tpu.memory_space<vmem>>, vector<8x8xf32>
      tpu.vector_store %arg8[%c0_19, %c0_20], %39 {strides = array<i32>} : memref<8x8xf32, #tpu.memory_space<vmem>>, vector<8x8xf32>,
    } else {
    }
    return
  }
  func.func @transform_0(%arg0: i32, %arg1: i32) -> (i32, i32) {
    %c0_i32 = arith.constant 0 : i32
    %c0_i32_0 = arith.constant 0 : i32
    return %arg0, %c0_i32 : i32, i32
  }
  func.func @transform_1(%arg0: i32, %arg1: i32) -> (i32, i32, i32) {
    %c0_i32 = arith.constant 0 : i32
    %c0_i32_0 = arith.constant 0 : i32
    return %arg1, %arg0, %c0_i32 : i32, i32, i32
  }
  func.func @transform_2(%arg0: i32, %arg1: i32) -> (i32, i32) {
    %c0_i32 = arith.constant 0 : i32
    %c0_i32_0 = arith.constant 0 : i32
    %c0_i32_1 = arith.constant 0 : i32
    return %c0_i32, %c0_i32_0 : i32, i32
  }
  func.func @transform_3(%arg0: i32, %arg1: i32) -> (i32, i32) {
    %c0_i32 = arith.constant 0 : i32
    %c0_i32_0 = arith.constant 0 : i32
    %c0_i32_1 = arith.constant 0 : i32
    return %c0_i32, %c0_i32_0 : i32, i32
  }
  func.func @transform_4(%arg0: i32, %arg1: i32) -> (i32, i32) {
    %c0_i32 = arith.constant 0 : i32
    %c0_i32_0 = arith.constant 0 : i32
    %c0_i32_1 = arith.constant 0 : i32
    return %c0_i32, %c0_i32_0 : i32, i32
  }
  func.func @transform_5(%arg0: i32, %arg1: i32) -> (i32, i32) {
    %c0_i32 = arith.constant 0 : i32
    %c0_i32_0 = arith.constant 0 : i32
    %c0_i32_1 = arith.constant 0 : i32
    return %c0_i32, %c0_i32_0 : i32, i32
  }
  func.func @transform_6(%arg0: i32, %arg1: i32) -> (i32, i32) {
    %c0_i32 = arith.constant 0 : i32
    %c0_i32_0 = arith.constant 0 : i32
    return %arg0, %c0_i32 : i32, i32
  }
}

</mosaic_0001>

<llo_original>
// kernel: tpu_custom_call.1
$region0: #{tpu_custom_call.1}
  #allocation0 [shape = 'u32[]', space=smem, size = 0x4, offset = 0x4, fixed_abs, tag = 'smem constant byte address 0x4 - core index']
  #allocation1 [shape = 'u32[144,128]{1,0:T(1,128)}', space=vmem, size = 0x12000, scoped, tag = 'internal scratch']
  #allocation2 [shape = 'f32[8,32]{1,0:T(8,128)}', space=vmem, size = 0x1000, scoped, tag = 'scratch operand']
  #allocation3 [shape = 'f32[8,8]{1,0:T(8,128)}', space=vmem, size = 0x1000, scoped, tag = 'scratch operand']
  %s0 = inlined_call_operand.hbm [shape: f32[8,32], index: 0, kind: input, shape index: {}]
  %s1 = inlined_call_operand.hbm [shape: f32[8,8,32], index: 1, kind: input, shape index: {}]
  %s2 = inlined_call_operand.hbm [shape: f32[32,32], index: 2, kind: input, shape index: {}]
  %s3 = inlined_call_operand.hbm [shape: f32[32,32], index: 3, kind: input, shape index: {}]
  %s4 = inlined_call_operand.vmem [shape: f32[1,32], index: 4, kind: input, shape index: {}]
  %s5 = inlined_call_operand.vmem [shape: f32[1,32], index: 5, kind: input, shape index: {}]
  %s6 = inlined_call_operand.hbm [shape: f32[8,8], index: 6, kind: output, shape index: {}]
  %s7 = sld [smem:[#allocation0]]
  $region58: #{tpu_custom_call.1} parent=0
    _
  %s9 = ssub.s32 1, %s7
  %s10 = scalar_select 0, %s9, %s7
  $region1: #{tpu_custom_call.1} parent=0
    #allocation4 [shape = 'u8[4096]{0}', space=vmem, size = 0x1000, scoped, tag = 'input window, operand 0, single buffered']
    #allocation5 [shape = 's32[1]{0}', space=sflag, size = 0x4, scoped, tag = 'scoped memory for tpu_custom_call.1']
    #allocation6 [shape = 's32[1]{0}', space=sflag, size = 0x4, scoped, tag = 'scoped memory for tpu_custom_call.1']
    #allocation7 [shape = 'u8[32768]{0}', space=vmem, size = 0x8000, scoped, tag = 'input window, operand 1, single buffered']
    #allocation8 [shape = 's32[1]{0}', space=sflag, size = 0x4, scoped, tag = 'scoped memory for tpu_custom_call.1']
    #allocation9 [shape = 'u8[16384]{0}', space=vmem, size = 0x4000, scoped, tag = 'input window, operand 2, single buffered']
    #allocation10 [shape = 'u8[16384]{0}', space=vmem, size = 0x4000, scoped, tag = 'input window, operand 3, single buffered']
    #allocation11 [shape = 's32[1]{0}', space=sflag, size = 0x4, scoped, tag = 'scoped memory for tpu_custom_call.1']
    #allocation12 [shape = 'u8[4096]{0}', space=vmem, size = 0x1000, scoped, tag = 'output window, operand 0, single buffered']
    %11 = vsyncpa [#allocation5], 0
    %12 = vsyncpa [#allocation8], 0
    %13 = vsyncpa [#allocation11], 0
    %14 = vsyncpa [#allocation6], 0
    // Predicated region
    $region2: #{tpu_custom_call.1} parent=1 // pred_check
      _
    $region3: #{tpu_custom_call.1} parent=1 // pred_check_branch
      %16 = sbr.rel (0) target = $region5
    $region4: #{tpu_custom_call.1} parent=1 // pred_region
      %s18 = ssub.s32 128, 128
      %19 = vsyncadd [#allocation5], %s18
      %s21 = sshll.u32 [#allocation4], 4
      %s22 = int_to_ptr.vmem [resolvable:$true] %s21
      %24 = dma.hbm_to_vmem [thread:$0]  %s0, 128, %s22, [#allocation5]
    $region5: #{tpu_custom_call.1} parent=1 // pred_fallthru
      _
    // Predicated region
    $region6: #{tpu_custom_call.1} parent=1 // pred_check
      _
    $region7: #{tpu_custom_call.1} parent=1 // pred_check_branch
      %26 = sbr.rel (0) target = $region9
    $region8: #{tpu_custom_call.1} parent=1 // pred_region
      %s28 = ssub.s32 1024, 1024
      %29 = vsyncadd [#allocation8], %s28
      %s30 = sshll.u32 [#allocation7], 4
      %s31 = int_to_ptr.vmem [resolvable:$true] %s30
      %36 = dma.hbm_to_vmem [thread:$0]  %s1, 1024, %s31, [#allocation8], 128, 128, 8
    $region9: #{tpu_custom_call.1} parent=1 // pred_fallthru
      _
    // Predicated region
    $region10: #{tpu_custom_call.1} parent=1 // pred_check
      _
    $region11: #{tpu_custom_call.1} parent=1 // pred_check_branch
      %38 = sbr.rel (0) target = $region13
    $region12: #{tpu_custom_call.1} parent=1 // pred_region
      %s40 = ssub.s32 512, 512
      %41 = vsyncadd [#allocation8], %s40
      %s42 = sshll.u32 [#allocation9], 4
      %s43 = int_to_ptr.vmem [resolvable:$true] %s42
      %48 = dma.hbm_to_vmem [thread:$0]  %s2, 512, %s43, [#allocation8], 128, 128, 8
    $region13: #{tpu_custom_call.1} parent=1 // pred_fallthru
      _
    // Predicated region
    $region14: #{tpu_custom_call.1} parent=1 // pred_check
      _
    $region15: #{tpu_custom_call.1} parent=1 // pred_check_branch
      %50 = sbr.rel (0) target = $region17
    $region16: #{tpu_custom_call.1} parent=1 // pred_region
      %s52 = ssub.s32 512, 512
      %53 = vsyncadd [#allocation11], %s52
      %s54 = sshll.u32 [#allocation10], 4
      %s55 = int_to_ptr.vmem [resolvable:$true] %s54
      %60 = dma.hbm_to_vmem [thread:$0]  %s3, 512, %s55, [#allocation11], 128, 128, 8
    $region17: #{tpu_custom_call.1} parent=1 // pred_fallthru
      _
    // Predicated region
    $region18: #{tpu_custom_call.1} parent=1 // pred_check
      _
    $region19: #{tpu_custom_call.1} parent=1 // pred_check_branch
      %62 = sbr.rel (0) target = $region21
    $region20: #{tpu_custom_call.1} parent=1 // pred_region
      _
    $region21: #{tpu_custom_call.1} parent=1 // pred_fallthru
      _
    // Predicated region
    $region22: #{tpu_custom_call.1} parent=1 // pred_check
      _
    $region23: #{tpu_custom_call.1} parent=1 // pred_check_branch
      %64 = sbr.rel (0) target = $region25
    $region24: #{tpu_custom_call.1} parent=1 // pred_region
      _
    $region25: #{tpu_custom_call.1} parent=1 // pred_fallthru
      _
    // Predicated region
    $region26: #{tpu_custom_call.1} parent=1 // pred_check
      _
    $region27: #{tpu_custom_call.1} parent=1 // pred_check_branch
      %66 = sbr.rel (0) target = $region29
    $region28: #{tpu_custom_call.1} parent=1 // pred_region
      %67 = dma.done [#allocation5], 128
    $region29: #{tpu_custom_call.1} parent=1 // pred_fallthru
      _
    // Predicated region
    $region30: #{tpu_custom_call.1} parent=1 // pred_check
      _
    $region31: #{tpu_custom_call.1} parent=1 // pred_check_branch
      %69 = sbr.rel (0) target = $region33
    $region32: #{tpu_custom_call.1} parent=1 // pred_region
      %70 = dma.done [#allocation8], 1024
    $region33: #{tpu_custom_call.1} parent=1 // pred_fallthru
      _
    // Predicated region
    $region34: #{tpu_custom_call.1} parent=1 // pred_check
      _
    $region35: #{tpu_custom_call.1} parent=1 // pred_check_branch
      %72 = sbr.rel (0) target = $region37
    $region36: #{tpu_custom_call.1} parent=1 // pred_region
      %73 = dma.done [#allocation8], 512
    $region37: #{tpu_custom_call.1} parent=1 // pred_fallthru
      _
    // Predicated region
    $region38: #{tpu_custom_call.1} parent=1 // pred_check
      _
    $region39: #{tpu_custom_call.1} parent=1 // pred_check_branch
      %75 = sbr.rel (0) target = $region41
    $region40: #{tpu_custom_call.1} parent=1 // pred_region
      %76 = dma.done [#allocation11], 512
    $region41: #{tpu_custom_call.1} parent=1 // pred_fallthru
      _
    %p77 = scmp.eq.s32.totalorder 0, 0
    // Predicated region
    $region42: #{tpu_custom_call.1} parent=1 // pred_check
      %p78 = pneg %p77
    $region43: #{tpu_custom_call.1} parent=1 // pred_check_branch
      %80 = sbr.rel (%p78) target = $region45
    $region44: #{tpu_custom_call.1} parent=1 // pred_region
      %v81 = vld [vmem:[#allocation4] sm:$0xff]
      %v82 = vld [vmem:[#allocation9] sm:$0xff]
      %v83 = vld [vmem:[#allocation9 + $0x8] sm:$0xff]
      %v84 = vld [vmem:[#allocation9 + $0x10] sm:$0xff]
      %v85 = vld [vmem:[#allocation9 + $0x18] sm:$0xff]
      %vm86 = vcmask 261120
      %v88 = vsel %vm86, %v81, 0
      %90 = vmatprep.subr.mxu0 0.0
      %91 = vmatpush1.msra.mxu0 %v82
      %92 = vmatprep.subr.mxu0 0.0
      %93 = vmatpush1.msra.mxu0 %v83
      %94 = vmatprep.subr.mxu0 0.0
      %95 = vmatpush1.msra.mxu0 %v84
      %96 = vmatprep.subr.mxu0 0.0
      %97 = vmatpush1.msra.mxu0 %v85
      %98 = vmatprep.subr.mxu0 0.0
      %99 = vmatpush1.msra.mxu0 0.0
      %100 = vmatprep.subr.mxu0 0.0
      %101 = vmatpush1.msra.mxu0 0.0
      %102 = vmatprep.subr.mxu0 0.0
      %103 = vmatpush1.msra.mxu0 0.0
      %104 = vmatprep.subr.mxu0 0.0
      %105 = vmatpush1.msra.mxu0 0.0
      %106 = vmatprep.subr.mxu0 0.0
      %107 = vmatpush1.msra.mxu0 0.0
      %108 = vmatprep.subr.mxu0 0.0
      %109 = vmatpush1.msra.mxu0 0.0
      %110 = vmatprep.subr.mxu0 0.0
      %111 = vmatpush1.msra.mxu0 0.0
      %112 = vmatprep.subr.mxu0 0.0
      %113 = vmatpush1.msra.mxu0 0.0
      %114 = vmatprep.subr.mxu0 0.0
      %115 = vmatpush1.msra.mxu0 0.0
      %116 = vmatprep.subr.mxu0 0.0
      %117 = vmatpush1.msra.mxu0 0.0
      %118 = vmatprep.subr.mxu0 0.0
      %119 = vmatpush1.msra.mxu0 0.0
      %120 = vmatprep.subr.mxu0 0.0
      %121 = vmatpush1.msra.mxu0 0.0
      %122 = vmatprep.subr.mxu0 0.0
      %123 = vmatpush1.msra.mxu0 0.0
      %124 = vmatprep.subr.mxu0 0.0
      %125 = vmatpush1.msra.mxu0 0.0
      %126 = vmatprep.subr.mxu0 0.0
      %127 = vmatpush1.msra.mxu0 0.0
      %128 = vmatprep.subr.mxu0 0.0
      %129 = vmatpush1.msra.mxu0 0.0
      %130 = vmatprep.subr.mxu0 0.0
      %131 = vmatpush1.msra.mxu0 0.0
      %132 = vmatprep.subr.mxu0 0.0
      %133 = vmatpush1.msra.mxu0 0.0
      %134 = vmatprep.subr.mxu0 0.0
      %135 = vmatpush1.msra.mxu0 0.0
      %136 = vmatprep.subr.mxu0 0.0
      %137 = vmatpush1.msra.mxu0 0.0
      %138 = vmatprep.subr.mxu0 0.0
      %139 = vmatpush1.msra.mxu0 0.0
      %140 = vmatprep.subr.mxu0 0.0
      %141 = vmatpush1.msra.mxu0 0.0
      %142 = vmatprep.subr.mxu0 0.0
      %143 = vmatpush1.msra.mxu0 0.0
      %144 = vmatprep.subr.mxu0 0.0
      %145 = vmatpush1.msra.mxu0 0.0
      %146 = vmatprep.subr.mxu0 0.0
      %147 = vmatpush1.msra.mxu0 0.0
      %148 = vmatprep.subr.mxu0 0.0
      %149 = vmatpush1.msra.mxu0 0.0
      %150 = vmatprep.subr.mxu0 0.0
      %151 = vmatpush1.msra.mxu0 0.0
      %152 = vmatprep.subr.mxu0 0.0
      %153 = vmatpush1.msra.mxu0 0.0
      %154 = vmatprep.mubr.f32.mxu0 0.0
      %155 = vmatmul.mubr.f32.gmra.mrb[0].mxu0 %v88
      %v156 = vpop.f32.mrb[0].mxu0
      %v157 = vadd.f32 0.0, %v156
      %v158 = vpop.f32.mrb[0].mxu0
      %159 = vdwg.mxu0
      %160 = vst.msk [vmem:[#allocation2] sm:$0xff] %vm86, %v157
    $region45: #{tpu_custom_call.1} parent=1 // pred_fallthru
      _
    %v161 = vld [vmem:[#allocation7] sm:$0xff]
    %v162 = vld [vmem:[#allocation7 + $0x8] sm:$0xff]
    %v163 = vld [vmem:[#allocation7 + $0x10] sm:$0xff]
    %v164 = vld [vmem:[#allocation7 + $0x18] sm:$0xff]
    %v165 = vld [vmem:[#allocation7 + $0x20] sm:$0xff]
    %v166 = vld [vmem:[#allocation7 + $0x28] sm:$0xff]
    %v167 = vld [vmem:[#allocation7 + $0x30] sm:$0xff]
    %v168 = vld [vmem:[#allocation7 + $0x38] sm:$0xff]
    %v169 = vld [vmem:[#allocation10] sm:$0xff]
    %v170 = vld [vmem:[#allocation10 + $0x8] sm:$0xff]
    %v171 = vld [vmem:[#allocation10 + $0x10] sm:$0xff]
    %v172 = vld [vmem:[#allocation10 + $0x18] sm:$0xff]
    %vm173 = vcmask 261120
    %v175 = vsel %vm173, %v161, 0
    %v178 = vsel %vm173, %v162, 0
    %v181 = vsel %vm173, %v163, 0
    %v184 = vsel %vm173, %v164, 0
    %v187 = vsel %vm173, %v165, 0
    %v190 = vsel %vm173, %v166, 0
    %v193 = vsel %vm173, %v167, 0
    %v196 = vsel %vm173, %v168, 0
    %198 = vmatprep.subr.mxu0 0.0
    %199 = vmatpush1.msra.mxu0 %v169
    %200 = vmatprep.subr.mxu0 0.0
    %201 = vmatpush1.msra.mxu0 %v170
    %202 = vmatprep.subr.mxu0 0.0
    %203 = vmatpush1.msra.mxu0 %v171
    %204 = vmatprep.subr.mxu0 0.0
    %205 = vmatpush1.msra.mxu0 %v172
    %206 = vmatprep.subr.mxu0 0.0
    %207 = vmatpush1.msra.mxu0 0.0
    %208 = vmatprep.subr.mxu0 0.0
    %209 = vmatpush1.msra.mxu0 0.0
    %210 = vmatprep.subr.mxu0 0.0
    %211 = vmatpush1.msra.mxu0 0.0
    %212 = vmatprep.subr.mxu0 0.0
    %213 = vmatpush1.msra.mxu0 0.0
    %214 = vmatprep.subr.mxu0 0.0
    %215 = vmatpush1.msra.mxu0 0.0
    %216 = vmatprep.subr.mxu0 0.0
    %217 = vmatpush1.msra.mxu0 0.0
    %218 = vmatprep.subr.mxu0 0.0
    %219 = vmatpush1.msra.mxu0 0.0
    %220 = vmatprep.subr.mxu0 0.0
    %221 = vmatpush1.msra.mxu0 0.0
    %222 = vmatprep.subr.mxu0 0.0
    %223 = vmatpush1.msra.mxu0 0.0
    %224 = vmatprep.subr.mxu0 0.0
    %225 = vmatpush1.msra.mxu0 0.0
    %226 = vmatprep.subr.mxu0 0.0
    %227 = vmatpush1.msra.mxu0 0.0
    %228 = vmatprep.subr.mxu0 0.0
    %229 = vmatpush1.msra.mxu0 0.0
    %230 = vmatprep.subr.mxu0 0.0
    %231 = vmatpush1.msra.mxu0 0.0
    %232 = vmatprep.subr.mxu0 0.0
    %233 = vmatpush1.msra.mxu0 0.0
    %234 = vmatprep.subr.mxu0 0.0
    %235 = vmatpush1.msra.mxu0 0.0
    %236 = vmatprep.subr.mxu0 0.0
    %237 = vmatpush1.msra.mxu0 0.0
    %238 = vmatprep.subr.mxu0 0.0
    %239 = vmatpush1.msra.mxu0 0.0
    %240 = vmatprep.subr.mxu0 0.0
    %241 = vmatpush1.msra.mxu0 0.0
    %242 = vmatprep.subr.mxu0 0.0
    %243 = vmatpush1.msra.mxu0 0.0
    %244 = vmatprep.subr.mxu0 0.0
    %245 = vmatpush1.msra.mxu0 0.0
    %246 = vmatprep.subr.mxu0 0.0
    %247 = vmatpush1.msra.mxu0 0.0
    %248 = vmatprep.subr.mxu0 0.0
    %249 = vmatpush1.msra.mxu0 0.0
    %250 = vmatprep.subr.mxu0 0.0
    %251 = vmatpush1.msra.mxu0 0.0
    %252 = vmatprep.subr.mxu0 0.0
    %253 = vmatpush1.msra.mxu0 0.0
    %254 = vmatprep.subr.mxu0 0.0
    %255 = vmatpush1.msra.mxu0 0.0
    %256 = vmatprep.subr.mxu0 0.0
    %257 = vmatpush1.msra.mxu0 0.0
    %258 = vmatprep.subr.mxu0 0.0
    %259 = vmatpush1.msra.mxu0 0.0
    %260 = vmatprep.subr.mxu0 0.0
    %261 = vmatpush1.msra.mxu0 0.0
    %262 = vmatprep.mubr.f32.mxu0 0.0
    %263 = vmatmul.mubr.f32.gmra.mrb[0].mxu0 %v175
    %v264 = vpop.f32.mrb[0].mxu0
    %v265 = vadd.f32 0.0, %v264
    %v266 = vpop.f32.mrb[0].mxu0
    %267 = vmatprep.mubr.f32.mxu0 0.0
    %268 = vmatmul.mubr.f32.gmra.mrb[0].mxu0 %v178
    %v269 = vpop.f32.mrb[0].mxu0
    %v270 = vadd.f32 0.0, %v269
    %v271 = vpop.f32.mrb[0].mxu0
    %272 = vmatprep.mubr.f32.mxu0 0.0
    %273 = vmatmul.mubr.f32.gmra.mrb[0].mxu0 %v181
    %v274 = vpop.f32.mrb[0].mxu0
    %v275 = vadd.f32 0.0, %v274
    %v276 = vpop.f32.mrb[0].mxu0
    %277 = vmatprep.mubr.f32.mxu0 0.0
    %278 = vmatmul.mubr.f32.gmra.mrb[0].mxu0 %v184
    %v279 = vpop.f32.mrb[0].mxu0
    %v280 = vadd.f32 0.0, %v279
    %v281 = vpop.f32.mrb[0].mxu0
    %282 = vmatprep.mubr.f32.mxu0 0.0
    %283 = vmatmul.mubr.f32.gmra.mrb[0].mxu0 %v187
    %v284 = vpop.f32.mrb[0].mxu0
    %v285 = vadd.f32 0.0, %v284
    %v286 = vpop.f32.mrb[0].mxu0
    %287 = vmatprep.mubr.f32.mxu0 0.0
    %288 = vmatmul.mubr.f32.gmra.mrb[0].mxu0 %v190
    %v289 = vpop.f32.mrb[0].mxu0
    %v290 = vadd.f32 0.0, %v289
    %v291 = vpop.f32.mrb[0].mxu0
    %292 = vmatprep.mubr.f32.mxu0 0.0
    %293 = vmatmul.mubr.f32.gmra.mrb[0].mxu0 %v193
    %v294 = vpop.f32.mrb[0].mxu0
    %v295 = vadd.f32 0.0, %v294
    %v296 = vpop.f32.mrb[0].mxu0
    %297 = vmatprep.mubr.f32.mxu0 0.0
    %298 = vmatmul.mubr.f32.gmra.mrb[0].mxu0 %v196
    %v299 = vpop.f32.mrb[0].mxu0
    %v300 = vadd.f32 0.0, %v299
    %v301 = vpop.f32.mrb[0].mxu0
    %302 = vdwg.mxu0
    %v303 = vld [vmem:[#allocation2] sm:$0xff]
    %v304 = vadd.f32 %v265, %v303
    %v305 = vadd.f32 %v270, %v303
    %v306 = vadd.f32 %v275, %v303
    %v307 = vadd.f32 %v280, %v303
    %v308 = vadd.f32 %v285, %v303
    %v309 = vadd.f32 %v290, %v303
    %v310 = vadd.f32 %v295, %v303
    %v311 = vadd.f32 %v300, %v303
    %v312 = vld [vmem:[%s4] sm:$0x1]
    %v314 = vlaneseq
    %v315 = vshrl.u32 %v314, 7
    %v316 = vsub.s32 0, %v315
    %v317 = vrot.slane %v312, %v316
    %v319 = vadd.f32 %v304, %v317
    %v320 = vadd.f32 %v305, %v317
    %v321 = vadd.f32 %v306, %v317
    %v322 = vadd.f32 %v307, %v317
    %v323 = vadd.f32 %v308, %v317
    %v324 = vadd.f32 %v309, %v317
    %v325 = vadd.f32 %v310, %v317
    %v326 = vadd.f32 %v311, %v317
    %v327 = vtanh.pop %v319
    %v328 = vtanh.pop %v320
    %v329 = vtanh.pop %v321
    %v330 = vtanh.pop %v322
    %v331 = vtanh.pop %v323
    %v332 = vtanh.pop %v324
    %v333 = vtanh.pop %v325
    %v334 = vtanh.pop %v326
    %v335 = vld [vmem:[%s5] sm:$0x1]
    %v337 = vlaneseq
    %v338 = vshrl.u32 %v337, 7
    %v339 = vsub.s32 0, %v338
    %v340 = vrot.slane %v335, %v339
    %v342 = vmul.f32 %v327, %v340
    %v343 = vmul.f32 %v328, %v340
    %v344 = vmul.f32 %v329, %v340
    %v345 = vmul.f32 %v330, %v340
    %v346 = vmul.f32 %v331, %v340
    %v347 = vmul.f32 %v332, %v340
    %v348 = vmul.f32 %v333, %v340
    %v349 = vmul.f32 %v334, %v340
    %v350 = vsel %vm173, %v342, 0.0
    %351 = vadd.xlane.f32.xlu0 %v350
    %v352 = vpop.xlane.xlu0 %351
    %v353 = vsel %vm173, %v343, 0.0
    %354 = vadd.xlane.f32.xlu0 %v353
    %v355 = vpop.xlane.xlu0 %354
    %v356 = vsel %vm173, %v344, 0.0
    %357 = vadd.xlane.f32.xlu0 %v356
    %v358 = vpop.xlane.xlu0 %357
    %v359 = vsel %vm173, %v345, 0.0
    %360 = vadd.xlane.f32.xlu0 %v359
    %v361 = vpop.xlane.xlu0 %360
    %v362 = vsel %vm173, %v346, 0.0
    %363 = vadd.xlane.f32.xlu0 %v362
    %v364 = vpop.xlane.xlu0 %363
    %v365 = vsel %vm173, %v347, 0.0
    %366 = vadd.xlane.f32.xlu0 %v365
    %v367 = vpop.xlane.xlu0 %366
    %v368 = vsel %vm173, %v348, 0.0
    %369 = vadd.xlane.f32.xlu0 %v368
    %v370 = vpop.xlane.xlu0 %369
    %v371 = vsel %vm173, %v349, 0.0
    %372 = vadd.xlane.f32.xlu0 %v371
    %v373 = vpop.xlane.xlu0 %372
    %s374 = smul.u32 0, 8
    %v383 = vlaneseq
    %v384 = vand.u32 %v383, 127
    %v385 = vlaneseq
    %v386 = vshrl.u32 %v385, 7
    %v387 = vsub.s32 %v384, %v386
    %v388 = vrot.slane %v352, %v387
    %v389 = vlaneseq
    %v390 = vshrl.u32 %v389, 7
    %v391 = vsub.s32 %v384, %v390
    %v392 = vrot.slane %v355, %v391
    %v393 = vlaneseq
    %v394 = vshrl.u32 %v393, 7
    %v395 = vsub.s32 %v384, %v394
    %v396 = vrot.slane %v358, %v395
    %v397 = vlaneseq
    %v398 = vshrl.u32 %v397, 7
    %v399 = vsub.s32 %v384, %v398
    %v400 = vrot.slane %v361, %v399
    %v401 = vlaneseq
    %v402 = vshrl.u32 %v401, 7
    %v403 = vsub.s32 %v384, %v402
    %v404 = vrot.slane %v364, %v403
    %v405 = vlaneseq
    %v406 = vshrl.u32 %v405, 7
    %v407 = vsub.s32 %v384, %v406
    %v408 = vrot.slane %v367, %v407
    %v409 = vlaneseq
    %v410 = vshrl.u32 %v409, 7
    %v411 = vsub.s32 %v384, %v410
    %v412 = vrot.slane %v370, %v411
    %v413 = vlaneseq
    %v414 = vshrl.u32 %v413, 7
    %v415 = vsub.s32 %v384, %v414
    %v416 = vrot.slane %v373, %v415
    %vm417 = vcmask 1041409
    %v418 = vsel %vm417, %v392, %v388
    %vm419 = vcmask 1042434
    %v420 = vsel %vm419, %v396, %v418
    %vm421 = vcmask 1043459
    %v422 = vsel %vm421, %v400, %v420
    %vm423 = vcmask 1044484
    %v424 = vsel %vm423, %v404, %v422
    %vm425 = vcmask 1045509
    %v426 = vsel %vm425, %v408, %v424
    %vm427 = vcmask 1046534
    %v428 = vsel %vm427, %v412, %v426
    %vm429 = vcmask 1047559
    %v430 = vsel %vm429, %v416, %v428
    %s432 = scalar_lea.vmem [#allocation3], %s374
    %vm433 = vcmask 64512
    %434 = vst.msk [vmem:[%s432] sm:$0xff] %vm433, %v430
    // Predicated region
    $region46: #{tpu_custom_call.1} parent=1 // pred_check
      %p435 = pneg %p77
    $region47: #{tpu_custom_call.1} parent=1 // pred_check_branch
      %437 = sbr.rel (%p435) target = $region49
    $region48: #{tpu_custom_call.1} parent=1 // pred_region
      %v438 = vld [vmem:[#allocation3] sm:$0xff]
      %v439 = vsel %vm433, %v438, -inf
      %v440 = vrot.slane %v439, 4
      %v441 = vmax.f32 %v439, %v440
      %v442 = vrot.slane %v441, 2
      %v443 = vmax.f32 %v441, %v442
      %v444 = vrot.slane %v443, 1
      %v445 = vmax.f32 %v443, %v444
      %v446 = vsub.f32 %v438, %v445
      %v447 = vmul.f32 %v446, 1.442695
      %v448 = vpow.pop %v447
      %v449 = vsel %vm433, %v448, 0.0
      %v450 = vrot.slane %v449, 4
      %v451 = vadd.f32 %v449, %v450
      %v452 = vrot.slane %v451, 2
      %v453 = vadd.f32 %v451, %v452
      %v454 = vrot.slane %v453, 1
      %v455 = vadd.f32 %v453, %v454
      %v456 = vrcp.pop %v455
      %v457 = vmul.f32 %v448, %v456
      %458 = vxpose.xlu0.b32.start [1/16] %v457, 128
      %459 = vxpose.xlu0.b32.cont [2/16] 0.0, 128
      %460 = vxpose.xlu0.b32.cont [3/16] 0.0, 128
      %461 = vxpose.xlu0.b32.cont [4/16] 0.0, 128
      %462 = vxpose.xlu0.b32.cont [5/16] 0.0, 128
      %463 = vxpose.xlu0.b32.cont [6/16] 0.0, 128
      %464 = vxpose.xlu0.b32.cont [7/16] 0.0, 128
      %465 = vxpose.xlu0.b32.cont [8/16] 0.0, 128
      %466 = vxpose.xlu0.b32.cont [9/16] 0.0, 128
      %467 = vxpose.xlu0.b32.cont [10/16] 0.0, 128
      %468 = vxpose.xlu0.b32.cont [11/16] 0.0, 128
      %469 = vxpose.xlu0.b32.cont [12/16] 0.0, 128
      %470 = vxpose.xlu0.b32.cont [13/16] 0.0, 128
      %471 = vxpose.xlu0.b32.cont [14/16] 0.0, 128
      %472 = vxpose.xlu0.b32.cont [15/16] 0.0, 128
      %473 = vxpose.xlu0.b32.end [16/16] 0.0, 128
      %v474 = vpop.trf.xlu0
      %v475 = vpop.trf.xlu0
      %v476 = vpop.trf.xlu0
      %v477 = vpop.trf.xlu0
      %v478 = vpop.trf.xlu0
      %v479 = vpop.trf.xlu0
      %v480 = vpop.trf.xlu0
      %v481 = vpop.trf.xlu0
      %v482 = vpop.trf.xlu0
      %v483 = vpop.trf.xlu0
      %v484 = vpop.trf.xlu0
      %v485 = vpop.trf.xlu0
      %v486 = vpop.trf.xlu0
      %v487 = vpop.trf.xlu0
      %v488 = vpop.trf.xlu0
      %v489 = vpop.trf.xlu0
      %490 = vst.msk [vmem:[#allocation12] sm:$0xff] %vm433, %v474
    $region49: #{tpu_custom_call.1} parent=1 // pred_fallthru
      _
    // Predicated region
    $region50: #{tpu_custom_call.1} parent=1 // pred_check
      _
    $region51: #{tpu_custom_call.1} parent=1 // pred_check_branch
      %492 = sbr.rel (0) target = $region53
    $region52: #{tpu_custom_call.1} parent=1 // pred_region
      %s494 = ssub.s32 128, 128
      %495 = vsyncadd [#allocation6], %s494
      %s497 = sshll.u32 [#allocation12], 4
      %s498 = int_to_ptr.vmem [resolvable:$true] %s497
      %500 = dma.vmem_to_hbm [thread:$0]  %s498, 128, %s6, [#allocation6]
    $region53: #{tpu_custom_call.1} parent=1 // pred_fallthru
      _
    // Predicated region
    $region54: #{tpu_custom_call.1} parent=1 // pred_check
      _
    $region55: #{tpu_custom_call.1} parent=1 // pred_check_branch
      %502 = sbr.rel (0) target = $region57
    $region56: #{tpu_custom_call.1} parent=1 // pred_region
      %503 = dma.done [#allocation6], 128
    $region57: #{tpu_custom_call.1} parent=1 // pred_fallthru
      _
    %504 = vsyncpa [#allocation5], 1
    %505 = vsyncpa [#allocation8], 1
    %506 = vsyncpa [#allocation11], 1
    %507 = vsyncpa [#allocation6], 1

// kernel: tpu_custom_call.1
$region0: #{tpu_custom_call.1}
  #allocation0 [shape = 'u32[]', space=smem, size = 0x4, offset = 0x4, fixed_abs, tag = 'smem constant byte address 0x4 - core index']
  #allocation1 [shape = 'u32[144,128]{1,0:T(1,128)}', space=vmem, size = 0x12000, scoped, tag = 'internal scratch']
  #allocation2 [shape = 'f32[8,32]{1,0:T(8,128)}', space=vmem, size = 0x1000, scoped, tag = 'scratch operand']
  #allocation3 [shape = 'f32[8,8]{1,0:T(8,128)}', space=vmem, size = 0x1000, scoped, tag = 'scratch operand']
  %s0 = inlined_call_operand.hbm [shape: f32[8,32], index: 0, kind: input, shape index: {}]
  %s1 = inlined_call_operand.hbm [shape: f32[8,8,32], index: 1, kind: input, shape index: {}]
  %s2 = inlined_call_operand.hbm [shape: f32[32,32], index: 2, kind: input, shape index: {}]
  %s3 = inlined_call_operand.hbm [shape: f32[32,32], index: 3, kind: input, shape index: {}]
  %s4 = inlined_call_operand.vmem [shape: f32[1,32], index: 4, kind: input, shape index: {}]
  %s5 = inlined_call_operand.vmem [shape: f32[1,32], index: 5, kind: input, shape index: {}]
  %s6 = inlined_call_operand.hbm [shape: f32[8,8], index: 6, kind: output, shape index: {}]
  %s7 = sld [smem:[#allocation0]]
  $region58: #{tpu_custom_call.1} parent=0
    _
  %s9 = ssub.s32 1, %s7
  %s10 = scalar_select 0, %s9, %s7
  $region1: #{tpu_custom_call.1} parent=0
    #allocation4 [shape = 'u8[4096]{0}', space=vmem, size = 0x1000, scoped, tag = 'input window, operand 0, single buffered']
    #allocation5 [shape = 's32[1]{0}', space=sflag, size = 0x4, scoped, tag = 'scoped memory for tpu_custom_call.1']
    #allocation6 [shape = 's32[1]{0}', space=sflag, size = 0x4, scoped, tag = 'scoped memory for tpu_custom_call.1']
    #allocation7 [shape = 'u8[32768]{0}', space=vmem, size = 0x8000, scoped, tag = 'input window, operand 1, single buffered']
    #allocation8 [shape = 's32[1]{0}', space=sflag, size = 0x4, scoped, tag = 'scoped memory for tpu_custom_call.1']
    #allocation9 [shape = 'u8[16384]{0}', space=vmem, size = 0x4000, scoped, tag = 'input window, operand 2, single buffered']
    #allocation10 [shape = 'u8[16384]{0}', space=vmem, size = 0x4000, scoped, tag = 'input window, operand 3, single buffered']
    #allocation11 [shape = 's32[1]{0}', space=sflag, size = 0x4, scoped, tag = 'scoped memory for tpu_custom_call.1']
    #allocation12 [shape = 'u8[4096]{0}', space=vmem, size = 0x1000, scoped, tag = 'output window, operand 0, single buffered']
    %11 = vsyncpa [#allocation5], 0
    %12 = vsyncpa [#allocation8], 0
    %13 = vsyncpa [#allocation11], 0
    %14 = vsyncpa [#allocation6], 0
    // Predicated region
    $region2: #{tpu_custom_call.1} parent=1 // pred_check
      _
    $region3: #{tpu_custom_call.1} parent=1 // pred_check_branch
      %16 = sbr.rel (0) target = $region5
    $region4: #{tpu_custom_call.1} parent=1 // pred_region
      %s18 = ssub.s32 128, 128
      %19 = vsyncadd [#allocation5], %s18
      %s21 = sshll.u32 [#allocation4], 4
      %s22 = int_to_ptr.vmem [resolvable:$true] %s21
      %24 = dma.hbm_to_vmem [thread:$0]  %s0, 128, %s22, [#allocation5]
    $region5: #{tpu_custom_call.1} parent=1 // pred_fallthru
      _
    // Predicated region
    $region6: #{tpu_custom_call.1} parent=1 // pred_check
      _
    $region7: #{tpu_custom_call.1} parent=1 // pred_check_branch
      %26 = sbr.rel (0) target = $region9
    $region8: #{tpu_custom_call.1} parent=1 // pred_region
      %s28 = ssub.s32 1024, 1024
      %29 = vsyncadd [#allocation8], %s28
      %s30 = sshll.u32 [#allocation7], 4
      %s31 = int_to_ptr.vmem [resolvable:$true] %s30
      %36 = dma.hbm_to_vmem [thread:$0]  %s1, 1024, %s31, [#allocation8], 128, 128, 8
    $region9: #{tpu_custom_call.1} parent=1 // pred_fallthru
      _
    // Predicated region
    $region10: #{tpu_custom_call.1} parent=1 // pred_check
      _
    $region11: #{tpu_custom_call.1} parent=1 // pred_check_branch
      %38 = sbr.rel (0) target = $region13
    $region12: #{tpu_custom_call.1} parent=1 // pred_region
      %s40 = ssub.s32 512, 512
      %41 = vsyncadd [#allocation8], %s40
      %s42 = sshll.u32 [#allocation9], 4
      %s43 = int_to_ptr.vmem [resolvable:$true] %s42
      %48 = dma.hbm_to_vmem [thread:$0]  %s2, 512, %s43, [#allocation8], 128, 128, 8
    $region13: #{tpu_custom_call.1} parent=1 // pred_fallthru
      _
    // Predicated region
    $region14: #{tpu_custom_call.1} parent=1 // pred_check
      _
    $region15: #{tpu_custom_call.1} parent=1 // pred_check_branch
      %50 = sbr.rel (0) target = $region17
    $region16: #{tpu_custom_call.1} parent=1 // pred_region
      %s52 = ssub.s32 512, 512
      %53 = vsyncadd [#allocation11], %s52
      %s54 = sshll.u32 [#allocation10], 4
      %s55 = int_to_ptr.vmem [resolvable:$true] %s54
      %60 = dma.hbm_to_vmem [thread:$0]  %s3, 512, %s55, [#allocation11], 128, 128, 8
    $region17: #{tpu_custom_call.1} parent=1 // pred_fallthru
      _
    // Predicated region
    $region18: #{tpu_custom_call.1} parent=1 // pred_check
      _
    $region19: #{tpu_custom_call.1} parent=1 // pred_check_branch
      %62 = sbr.rel (0) target = $region21
    $region20: #{tpu_custom_call.1} parent=1 // pred_region
      _
    $region21: #{tpu_custom_call.1} parent=1 // pred_fallthru
      _
    // Predicated region
    $region22: #{tpu_custom_call.1} parent=1 // pred_check
      _
    $region23: #{tpu_custom_call.1} parent=1 // pred_check_branch
      %64 = sbr.rel (0) target = $region25
    $region24: #{tpu_custom_call.1} parent=1 // pred_region
      _
    $region25: #{tpu_custom_call.1} parent=1 // pred_fallthru
      _
    // Predicated region
    $region26: #{tpu_custom_call.1} parent=1 // pred_check
      _
    $region27: #{tpu_custom_call.1} parent=1 // pred_check_branch
      %66 = sbr.rel (0) target = $region29
    $region28: #{tpu_custom_call.1} parent=1 // pred_region
      %67 = dma.done [#allocation5], 128
    $region29: #{tpu_custom_call.1} parent=1 // pred_fallthru
      _
    // Predicated region
    $region30: #{tpu_custom_call.1} parent=1 // pred_check
      _
    $region31: #{tpu_custom_call.1} parent=1 // pred_check_branch
      %69 = sbr.rel (0) target = $region33
    $region32: #{tpu_custom_call.1} parent=1 // pred_region
      %70 = dma.done [#allocation8], 1024
    $region33: #{tpu_custom_call.1} parent=1 // pred_fallthru
      _
    // Predicated region
    $region34: #{tpu_custom_call.1} parent=1 // pred_check
      _
    $region35: #{tpu_custom_call.1} parent=1 // pred_check_branch
      %72 = sbr.rel (0) target = $region37
    $region36: #{tpu_custom_call.1} parent=1 // pred_region
      %73 = dma.done [#allocation8], 512
    $region37: #{tpu_custom_call.1} parent=1 // pred_fallthru
      _
    // Predicated region
    $region38: #{tpu_custom_call.1} parent=1 // pred_check
      _
    $region39: #{tpu_custom_call.1} parent=1 // pred_check_branch
      %75 = sbr.rel (0) target = $region41
    $region40: #{tpu_custom_call.1} parent=1 // pred_region
      %76 = dma.done [#allocation11], 512
    $region41: #{tpu_custom_call.1} parent=1 // pred_fallthru
      _
    %p77 = scmp.eq.s32.totalorder 0, 0
    // Predicated region
    $region42: #{tpu_custom_call.1} parent=1 // pred_check
      %p78 = pneg %p77
    $region43: #{tpu_custom_call.1} parent=1 // pred_check_branch
      %80 = sbr.rel (%p78) target = $region45
    $region44: #{tpu_custom_call.1} parent=1 // pred_region
      %v81 = vld [vmem:[#allocation4] sm:$0xff]
      %v82 = vld [vmem:[#allocation9] sm:$0xff]
      %v83 = vld [vmem:[#allocation9 + $0x8] sm:$0xff]
      %v84 = vld [vmem:[#allocation9 + $0x10] sm:$0xff]
      %v85 = vld [vmem:[#allocation9 + $0x18] sm:$0xff]
      %vm86 = vcmask 261120
      %v88 = vsel %vm86, %v81, 0
      %90 = vmatprep.subr.mxu0 0.0
      %91 = vmatpush1.msra.mxu0 %v82
      %92 = vmatprep.subr.mxu0 0.0
      %93 = vmatpush1.msra.mxu0 %v83
      %94 = vmatprep.subr.mxu0 0.0
      %95 = vmatpush1.msra.mxu0 %v84
      %96 = vmatprep.subr.mxu0 0.0
      %97 = vmatpush1.msra.mxu0 %v85
      %98 = vmatprep.subr.mxu0 0.0
      %99 = vmatpush1.msra.mxu0 0.0
      %100 = vmatprep.subr.mxu0 0.0
      %101 = vmatpush1.msra.mxu0 0.0
      %102 = vmatprep.subr.mxu0 0.0
      %103 = vmatpush1.msra.mxu0 0.0
      %104 = vmatprep.subr.mxu0 0.0
      %105 = vmatpush1.msra.mxu0 0.0
      %106 = vmatprep.subr.mxu0 0.0
      %107 = vmatpush1.msra.mxu0 0.0
      %108 = vmatprep.subr.mxu0 0.0
      %109 = vmatpush1.msra.mxu0 0.0
      %110 = vmatprep.subr.mxu0 0.0
      %111 = vmatpush1.msra.mxu0 0.0
      %112 = vmatprep.subr.mxu0 0.0
      %113 = vmatpush1.msra.mxu0 0.0
      %114 = vmatprep.subr.mxu0 0.0
      %115 = vmatpush1.msra.mxu0 0.0
      %116 = vmatprep.subr.mxu0 0.0
      %117 = vmatpush1.msra.mxu0 0.0
      %118 = vmatprep.subr.mxu0 0.0
      %119 = vmatpush1.msra.mxu0 0.0
      %120 = vmatprep.subr.mxu0 0.0
      %121 = vmatpush1.msra.mxu0 0.0
      %122 = vmatprep.subr.mxu0 0.0
      %123 = vmatpush1.msra.mxu0 0.0
      %124 = vmatprep.subr.mxu0 0.0
      %125 = vmatpush1.msra.mxu0 0.0
      %126 = vmatprep.subr.mxu0 0.0
      %127 = vmatpush1.msra.mxu0 0.0
      %128 = vmatprep.subr.mxu0 0.0
      %129 = vmatpush1.msra.mxu0 0.0
      %130 = vmatprep.subr.mxu0 0.0
      %131 = vmatpush1.msra.mxu0 0.0
      %132 = vmatprep.subr.mxu0 0.0
      %133 = vmatpush1.msra.mxu0 0.0
      %134 = vmatprep.subr.mxu0 0.0
      %135 = vmatpush1.msra.mxu0 0.0
      %136 = vmatprep.subr.mxu0 0.0
      %137 = vmatpush1.msra.mxu0 0.0
      %138 = vmatprep.subr.mxu0 0.0
      %139 = vmatpush1.msra.mxu0 0.0
      %140 = vmatprep.subr.mxu0 0.0
      %141 = vmatpush1.msra.mxu0 0.0
      %142 = vmatprep.subr.mxu0 0.0
      %143 = vmatpush1.msra.mxu0 0.0
      %144 = vmatprep.subr.mxu0 0.0
      %145 = vmatpush1.msra.mxu0 0.0
      %146 = vmatprep.subr.mxu0 0.0
      %147 = vmatpush1.msra.mxu0 0.0
      %148 = vmatprep.subr.mxu0 0.0
      %149 = vmatpush1.msra.mxu0 0.0
      %150 = vmatprep.subr.mxu0 0.0
      %151 = vmatpush1.msra.mxu0 0.0
      %152 = vmatprep.subr.mxu0 0.0
      %153 = vmatpush1.msra.mxu0 0.0
      %154 = vmatprep.mubr.f32.mxu0 0.0
      %155 = vmatmul.mubr.f32.gmra.mrb[0].mxu0 %v88
      %v156 = vpop.f32.mrb[0].mxu0
      %v157 = vadd.f32 0.0, %v156
      %v158 = vpop.f32.mrb[0].mxu0
      %159 = vdwg.mxu0
      %160 = vst.msk [vmem:[#allocation2] sm:$0xff] %vm86, %v157
    $region45: #{tpu_custom_call.1} parent=1 // pred_fallthru
      _
    %v161 = vld [vmem:[#allocation7] sm:$0xff]
    %v162 = vld [vmem:[#allocation7 + $0x8] sm:$0xff]
    %v163 = vld [vmem:[#allocation7 + $0x10] sm:$0xff]
    %v164 = vld [vmem:[#allocation7 + $0x18] sm:$0xff]
    %v165 = vld [vmem:[#allocation7 + $0x20] sm:$0xff]
    %v166 = vld [vmem:[#allocation7 + $0x28] sm:$0xff]
    %v167 = vld [vmem:[#allocation7 + $0x30] sm:$0xff]
    %v168 = vld [vmem:[#allocation7 + $0x38] sm:$0xff]
    %v169 = vld [vmem:[#allocation10] sm:$0xff]
    %v170 = vld [vmem:[#allocation10 + $0x8] sm:$0xff]
    %v171 = vld [vmem:[#allocation10 + $0x10] sm:$0xff]
    %v172 = vld [vmem:[#allocation10 + $0x18] sm:$0xff]
    %vm173 = vcmask 261120
    %v175 = vsel %vm173, %v161, 0
    %v178 = vsel %vm173, %v162, 0
    %v181 = vsel %vm173, %v163, 0
    %v184 = vsel %vm173, %v164, 0
    %v187 = vsel %vm173, %v165, 0
    %v190 = vsel %vm173, %v166, 0
    %v193 = vsel %vm173, %v167, 0
    %v196 = vsel %vm173, %v168, 0
    %198 = vmatprep.subr.mxu0 0.0
    %199 = vmatpush1.msra.mxu0 %v169
    %200 = vmatprep.subr.mxu0 0.0
    %201 = vmatpush1.msra.mxu0 %v170
    %202 = vmatprep.subr.mxu0 0.0
    %203 = vmatpush1.msra.mxu0 %v171
    %204 = vmatprep.subr.mxu0 0.0
    %205 = vmatpush1.msra.mxu0 %v172
    %206 = vmatprep.subr.mxu0 0.0
    %207 = vmatpush1.msra.mxu0 0.0
    %208 = vmatprep.subr.mxu0 0.0
    %209 = vmatpush1.msra.mxu0 0.0
    %210 = vmatprep.subr.mxu0 0.0
    %211 = vmatpush1.msra.mxu0 0.0
    %212 = vmatprep.subr.mxu0 0.0
    %213 = vmatpush1.msra.mxu0 0.0
    %214 = vmatprep.subr.mxu0 0.0
    %215 = vmatpush1.msra.mxu0 0.0
    %216 = vmatprep.subr.mxu0 0.0
    %217 = vmatpush1.msra.mxu0 0.0
    %218 = vmatprep.subr.mxu0 0.0
    %219 = vmatpush1.msra.mxu0 0.0
    %220 = vmatprep.subr.mxu0 0.0
    %221 = vmatpush1.msra.mxu0 0.0
    %222 = vmatprep.subr.mxu0 0.0
    %223 = vmatpush1.msra.mxu0 0.0
    %224 = vmatprep.subr.mxu0 0.0
    %225 = vmatpush1.msra.mxu0 0.0
    %226 = vmatprep.subr.mxu0 0.0
    %227 = vmatpush1.msra.mxu0 0.0
    %228 = vmatprep.subr.mxu0 0.0
    %229 = vmatpush1.msra.mxu0 0.0
    %230 = vmatprep.subr.mxu0 0.0
    %231 = vmatpush1.msra.mxu0 0.0
    %232 = vmatprep.subr.mxu0 0.0
    %233 = vmatpush1.msra.mxu0 0.0
    %234 = vmatprep.subr.mxu0 0.0
    %235 = vmatpush1.msra.mxu0 0.0
    %236 = vmatprep.subr.mxu0 0.0
    %237 = vmatpush1.msra.mxu0 0.0
    %238 = vmatprep.subr.mxu0 0.0
    %239 = vmatpush1.msra.mxu0 0.0
    %240 = vmatprep.subr.mxu0 0.0
    %241 = vmatpush1.msra.mxu0 0.0
    %242 = vmatprep.subr.mxu0 0.0
    %243 = vmatpush1.msra.mxu0 0.0
    %244 = vmatprep.subr.mxu0 0.0
    %245 = vmatpush1.msra.mxu0 0.0
    %246 = vmatprep.subr.mxu0 0.0
    %247 = vmatpush1.msra.mxu0 0.0
    %248 = vmatprep.subr.mxu0 0.0
    %249 = vmatpush1.msra.mxu0 0.0
    %250 = vmatprep.subr.mxu0 0.0
    %251 = vmatpush1.msra.mxu0 0.0
    %252 = vmatprep.subr.mxu0 0.0
    %253 = vmatpush1.msra.mxu0 0.0
    %254 = vmatprep.subr.mxu0 0.0
    %255 = vmatpush1.msra.mxu0 0.0
    %256 = vmatprep.subr.mxu0 0.0
    %257 = vmatpush1.msra.mxu0 0.0
    %258 = vmatprep.subr.mxu0 0.0
    %259 = vmatpush1.msra.mxu0 0.0
    %260 = vmatprep.subr.mxu0 0.0
    %261 = vmatpush1.msra.mxu0 0.0
    %262 = vmatprep.mubr.f32.mxu0 0.0
    %263 = vmatmul.mubr.f32.gmra.mrb[0].mxu0 %v175
    %v264 = vpop.f32.mrb[0].mxu0
    %v265 = vadd.f32 0.0, %v264
    %v266 = vpop.f32.mrb[0].mxu0
    %267 = vmatprep.mubr.f32.mxu0 0.0
    %268 = vmatmul.mubr.f32.gmra.mrb[0].mxu0 %v178
    %v269 = vpop.f32.mrb[0].mxu0
    %v270 = vadd.f32 0.0, %v269
    %v271 = vpop.f32.mrb[0].mxu0
    %272 = vmatprep.mubr.f32.mxu0 0.0
    %273 = vmatmul.mubr.f32.gmra.mrb[0].mxu0 %v181
    %v274 = vpop.f32.mrb[0].mxu0
    %v275 = vadd.f32 0.0, %v274
    %v276 = vpop.f32.mrb[0].mxu0
    %277 = vmatprep.mubr.f32.mxu0 0.0
    %278 = vmatmul.mubr.f32.gmra.mrb[0].mxu0 %v184
    %v279 = vpop.f32.mrb[0].mxu0
    %v280 = vadd.f32 0.0, %v279
    %v281 = vpop.f32.mrb[0].mxu0
    %282 = vmatprep.mubr.f32.mxu0 0.0
    %283 = vmatmul.mubr.f32.gmra.mrb[0].mxu0 %v187
    %v284 = vpop.f32.mrb[0].mxu0
    %v285 = vadd.f32 0.0, %v284
    %v286 = vpop.f32.mrb[0].mxu0
    %287 = vmatprep.mubr.f32.mxu0 0.0
    %288 = vmatmul.mubr.f32.gmra.mrb[0].mxu0 %v190
    %v289 = vpop.f32.mrb[0].mxu0
    %v290 = vadd.f32 0.0, %v289
    %v291 = vpop.f32.mrb[0].mxu0
    %292 = vmatprep.mubr.f32.mxu0 0.0
    %293 = vmatmul.mubr.f32.gmra.mrb[0].mxu0 %v193
    %v294 = vpop.f32.mrb[0].mxu0
    %v295 = vadd.f32 0.0, %v294
    %v296 = vpop.f32.mrb[0].mxu0
    %297 = vmatprep.mubr.f32.mxu0 0.0
    %298 = vmatmul.mubr.f32.gmra.mrb[0].mxu0 %v196
    %v299 = vpop.f32.mrb[0].mxu0
    %v300 = vadd.f32 0.0, %v299
    %v301 = vpop.f32.mrb[0].mxu0
    %302 = vdwg.mxu0
    %v303 = vld [vmem:[#allocation2] sm:$0xff]
    %v304 = vadd.f32 %v265, %v303
    %v305 = vadd.f32 %v270, %v303
    %v306 = vadd.f32 %v275, %v303
    %v307 = vadd.f32 %v280, %v303
    %v308 = vadd.f32 %v285, %v303
    %v309 = vadd.f32 %v290, %v303
    %v310 = vadd.f32 %v295, %v303
    %v311 = vadd.f32 %v300, %v303
    %v312 = vld [vmem:[%s4] sm:$0x1]
    %v314 = vlaneseq
    %v315 = vshrl.u32 %v314, 7
    %v316 = vsub.s32 0, %v315
    %v317 = vrot.slane %v312, %v316
    %v319 = vadd.f32 %v304, %v317
    %v320 = vadd.f32 %v305, %v317
    %v321 = vadd.f32 %v306, %v317
    %v322 = vadd.f32 %v307, %v317
    %v323 = vadd.f32 %v308, %v317
    %v324 = vadd.f32 %v309, %v317
    %v325 = vadd.f32 %v310, %v317
    %v326 = vadd.f32 %v311, %v317
    %v327 = vtanh.pop %v319
    %v328 = vtanh.pop %v320
    %v329 = vtanh.pop %v321
    %v330 = vtanh.pop %v322
    %v331 = vtanh.pop %v323
    %v332 = vtanh.pop %v324
    %v333 = vtanh.pop %v325
    %v334 = vtanh.pop %v326
    %v335 = vld [vmem:[%s5] sm:$0x1]
    %v337 = vlaneseq
    %v338 = vshrl.u32 %v337, 7
    %v339 = vsub.s32 0, %v338
    %v340 = vrot.slane %v335, %v339
    %v342 = vmul.f32 %v327, %v340
    %v343 = vmul.f32 %v328, %v340
    %v344 = vmul.f32 %v329, %v340
    %v345 = vmul.f32 %v330, %v340
    %v346 = vmul.f32 %v331, %v340
    %v347 = vmul.f32 %v332, %v340
    %v348 = vmul.f32 %v333, %v340
    %v349 = vmul.f32 %v334, %v340
    %v350 = vsel %vm173, %v342, 0.0
    %351 = vadd.xlane.f32.xlu0 %v350
    %v352 = vpop.xlane.xlu0 %351
    %v353 = vsel %vm173, %v343, 0.0
    %354 = vadd.xlane.f32.xlu0 %v353
    %v355 = vpop.xlane.xlu0 %354
    %v356 = vsel %vm173, %v344, 0.0
    %357 = vadd.xlane.f32.xlu0 %v356
    %v358 = vpop.xlane.xlu0 %357
    %v359 = vsel %vm173, %v345, 0.0
    %360 = vadd.xlane.f32.xlu0 %v359
    %v361 = vpop.xlane.xlu0 %360
    %v362 = vsel %vm173, %v346, 0.0
    %363 = vadd.xlane.f32.xlu0 %v362
    %v364 = vpop.xlane.xlu0 %363
    %v365 = vsel %vm173, %v347, 0.0
    %366 = vadd.xlane.f32.xlu0 %v365
    %v367 = vpop.xlane.xlu0 %366
    %v368 = vsel %vm173, %v348, 0.0
    %369 = vadd.xlane.f32.xlu0 %v368
    %v370 = vpop.xlane.xlu0 %369
    %v371 = vsel %vm173, %v349, 0.0
    %372 = vadd.xlane.f32.xlu0 %v371
    %v373 = vpop.xlane.xlu0 %372
    %s374 = smul.u32 0, 8
    %v383 = vlaneseq
    %v384 = vand.u32 %v383, 127
    %v385 = vlaneseq
    %v386 = vshrl.u32 %v385, 7
    %v387 = vsub.s32 %v384, %v386
    %v388 = vrot.slane %v352, %v387
    %v389 = vlaneseq
    %v390 = vshrl.u32 %v389, 7
    %v391 = vsub.s32 %v384, %v390
    %v392 = vrot.slane %v355, %v391
    %v393 = vlaneseq
    %v394 = vshrl.u32 %v393, 7
    %v395 = vsub.s32 %v384, %v394
    %v396 = vrot.slane %v358, %v395
    %v397 = vlaneseq
    %v398 = vshrl.u32 %v397, 7
    %v399 = vsub.s32 %v384, %v398
    %v400 = vrot.slane %v361, %v399
    %v401 = vlaneseq
    %v402 = vshrl.u32 %v401, 7
    %v403 = vsub.s32 %v384, %v402
    %v404 = vrot.slane %v364, %v403
    %v405 = vlaneseq
    %v406 = vshrl.u32 %v405, 7
    %v407 = vsub.s32 %v384, %v406
    %v408 = vrot.slane %v367, %v407
    %v409 = vlaneseq
    %v410 = vshrl.u32 %v409, 7
    %v411 = vsub.s32 %v384, %v410
    %v412 = vrot.slane %v370, %v411
    %v413 = vlaneseq
    %v414 = vshrl.u32 %v413, 7
    %v415 = vsub.s32 %v384, %v414
    %v416 = vrot.slane %v373, %v415
    %vm417 = vcmask 1041409
    %v418 = vsel %vm417, %v392, %v388
    %vm419 = vcmask 1042434
    %v420 = vsel %vm419, %v396, %v418
    %vm421 = vcmask 1043459
    %v422 = vsel %vm421, %v400, %v420
    %vm423 = vcmask 1044484
    %v424 = vsel %vm423, %v404, %v422
    %vm425 = vcmask 1045509
    %v426 = vsel %vm425, %v408, %v424
    %vm427 = vcmask 1046534
    %v428 = vsel %vm427, %v412, %v426
    %vm429 = vcmask 1047559
    %v430 = vsel %vm429, %v416, %v428
    %s432 = scalar_lea.vmem [#allocation3], %s374
    %vm433 = vcmask 64512
    %434 = vst.msk [vmem:[%s432] sm:$0xff] %vm433, %v430
    // Predicated region
    $region46: #{tpu_custom_call.1} parent=1 // pred_check
      %p435 = pneg %p77
    $region47: #{tpu_custom_call.1} parent=1 // pred_check_branch
      %437 = sbr.rel (%p435) target = $region49
    $region48: #{tpu_custom_call.1} parent=1 // pred_region
      %v438 = vld [vmem:[#allocation3] sm:$0xff]
      %v439 = vsel %vm433, %v438, -inf
      %v440 = vrot.slane %v439, 4
      %v441 = vmax.f32 %v439, %v440
      %v442 = vrot.slane %v441, 2
      %v443 = vmax.f32 %v441, %v442
      %v444 = vrot.slane %v443, 1
      %v445 = vmax.f32 %v443, %v444
      %v446 = vsub.f32 %v438, %v445
      %v447 = vmul.f32 %v446, 1.442695
      %v448 = vpow.pop %v447
      %v449 = vsel %vm433, %v448, 0.0
      %v450 = vrot.slane %v449, 4
      %v451 = vadd.f32 %v449, %v450
      %v452 = vrot.slane %v451, 2
      %v453 = vadd.f32 %v451, %v452
      %v454 = vrot.slane %v453, 1
      %v455 = vadd.f32 %v453, %v454
      %v456 = vrcp.pop %v455
      %v457 = vmul.f32 %v448, %v456
      %458 = vxpose.xlu0.b32.start [1/16] %v457, 128
      %459 = vxpose.xlu0.b32.cont [2/16] 0.0, 128
      %460 = vxpose.xlu0.b32.cont [3/16] 0.0, 128
      %461 = vxpose.xlu0.b32.cont [4/16] 0.0, 128
      %462 = vxpose.xlu0.b32.cont [5/16] 0.0, 128
      %463 = vxpose.xlu0.b32.cont [6/16] 0.0, 128
      %464 = vxpose.xlu0.b32.cont [7/16] 0.0, 128
      %465 = vxpose.xlu0.b32.cont [8/16] 0.0, 128
      %466 = vxpose.xlu0.b32.cont [9/16] 0.0, 128
      %467 = vxpose.xlu0.b32.cont [10/16] 0.0, 128
      %468 = vxpose.xlu0.b32.cont [11/16] 0.0, 128
      %469 = vxpose.xlu0.b32.cont [12/16] 0.0, 128
      %470 = vxpose.xlu0.b32.cont [13/16] 0.0, 128
      %471 = vxpose.xlu0.b32.cont [14/16] 0.0, 128
      %472 = vxpose.xlu0.b32.cont [15/16] 0.0, 128
      %473 = vxpose.xlu0.b32.end [16/16] 0.0, 128
      %v474 = vpop.trf.xlu0
      %v475 = vpop.trf.xlu0
      %v476 = vpop.trf.xlu0
      %v477 = vpop.trf.xlu0
      %v478 = vpop.trf.xlu0
      %v479 = vpop.trf.xlu0
      %v480 = vpop.trf.xlu0
      %v481 = vpop.trf.xlu0
      %v482 = vpop.trf.xlu0
      %v483 = vpop.trf.xlu0
      %v484 = vpop.trf.xlu0
      %v485 = vpop.trf.xlu0
      %v486 = vpop.trf.xlu0
      %v487 = vpop.trf.xlu0
      %v488 = vpop.trf.xlu0
      %v489 = vpop.trf.xlu0
      %490 = vst.msk [vmem:[#allocation12] sm:$0xff] %vm433, %v474
    $region49: #{tpu_custom_call.1} parent=1 // pred_fallthru
      _
    // Predicated region
    $region50: #{tpu_custom_call.1} parent=1 // pred_check
      _
    $region51: #{tpu_custom_call.1} parent=1 // pred_check_branch
      %492 = sbr.rel (0) target = $region53
    $region52: #{tpu_custom_call.1} parent=1 // pred_region
      %s494 = ssub.s32 128, 128
      %495 = vsyncadd [#allocation6], %s494
      %s497 = sshll.u32 [#allocation12], 4
      %s498 = int_to_ptr.vmem [resolvable:$true] %s497
      %500 = dma.vmem_to_hbm [thread:$0]  %s498, 128, %s6, [#allocation6]
    $region53: #{tpu_custom_call.1} parent=1 // pred_fallthru
      _
    // Predicated region
    $region54: #{tpu_custom_call.1} parent=1 // pred_check
      _
    $region55: #{tpu_custom_call.1} parent=1 // pred_check_branch
      %502 = sbr.rel (0) target = $region57
    $region56: #{tpu_custom_call.1} parent=1 // pred_region
      %503 = dma.done [#allocation6], 128
    $region57: #{tpu_custom_call.1} parent=1 // pred_fallthru
      _
    %504 = vsyncpa [#allocation5], 1
    %505 = vsyncpa [#allocation8], 1
    %506 = vsyncpa [#allocation11], 1
    %507 = vsyncpa [#allocation6], 1

</llo_original>
